<compile_context>
chip_gen: v7x
topology: tpu7x:2x2x1
jax: 0.10.0
libtpu: 0.0.40
codegen_flags: <defaults>
</compile_context>

<pallas_src>
import functools

import jax
import jax.numpy as jnp
from jax import lax
from jax.experimental import pallas as pl
from jax.experimental.pallas import tpu as pltpu


# ------------------------------- Pallas kernel ------------------------------

def _dw_conv_bn_act_kernel(xt_ref, wt_ref, fold_ref, unfold_ref, g_ref, b_ref,
                           o_ref, *, kk, inv_count, eps):
    """Fused depthwise conv (pre-shifted taps) + BatchNorm (batch stats) + ReLU.

    xt_ref:     (KK, NOH, OWC)  pre-shifted, channel-expanded tap slabs
    wt_ref:     (KK, OWC)       per-tap weights tiled over the ow lane groups
    fold_ref:   (OWC, Cout)     lane-fold matrix   (sum over ow groups)
    unfold_ref: (Cout, OWC)     lane-unfold matrix (broadcast over ow groups)
    g_ref/b_ref:(1, Cout)       BN gamma / beta
    o_ref:      (NOH, OWC)      lane-dense output (N*OH sublanes, OW*Cout lanes)
    """
    # Depthwise stencil: KK aligned VPU multiply-accumulates.  Taps were shifted
    # at the host, so no lane/sublane-offset slicing -> no XLU relayout copies.
    acc = xt_ref[0] * wt_ref[0:1, :]
    for k in range(1, kk):
        acc = acc + xt_ref[k] * wt_ref[k:k + 1, :]

    # Per-channel batch statistics: sublane reduces for sum / sum-of-squares,
    # then ONE fused fold matmul (2, OWC) @ (OWC, Cout).
    srow = jnp.sum(acc, axis=0, keepdims=True)                    # (1, OWC)
    qrow = jnp.sum(acc * acc, axis=0, keepdims=True)              # (1, OWC)
    stats = jnp.dot(jnp.concatenate([srow, qrow], axis=0), fold_ref[...],
                    preferred_element_type=jnp.float32)           # (2, Cout)

    mean = stats[0:1] * inv_count                                 # (1, Cout)
    # TODO(synk): single-pass E[y^2]-E[y]^2 loses precision for very large
    # counts; switch to a centered two-pass variance when scaling this up.
    var = jnp.maximum(stats[1:2] * inv_count - mean * mean, 0.0)
    scale = g_ref[...] * lax.rsqrt(var + eps)                     # (1, Cout)
    shift = b_ref[...] - mean * scale                             # (1, Cout)

    # ONE fused unfold matmul broadcasts scale/shift back to the lane layout.
    ssf = jnp.dot(jnp.concatenate([scale, shift], axis=0), unfold_ref[...],
                  preferred_element_type=jnp.float32)             # (2, OWC)
    o_ref[...] = jnp.maximum(acc * ssf[0:1, :] + ssf[1:2, :], 0.0)  # act = ReLU


# -------------------------------- host wrapper -------------------------------

def dw_conv_bn_act_2d(x, weight, gamma, beta, *, stride=1, pad=0, dila=1,
                      eps=1e-8):
    """Forward of DwConvBnAct2D (act=ReLU).
    x: (N, Cin, H, W) NCHW f32; weight: (Cout, 1, KH, KW) depthwise (groups=Cin);
    gamma/beta: (Cout,)."""
    n, cin, h, w = x.shape
    cout, win, kh, kw = weight.shape
    assert win == 1 and cout % cin == 0, "expects depthwise weight (Cout,1,KH,KW)"
    assert kh == kw
    dm = cout // cin
    # TODO(synk): stride > 1 only needs strided tap extraction at the host; the
    # module instance below uses stride=1, keep that fast path.
    assert stride == 1

    oh = (h + 2 * pad - dila * (kh - 1) - 1) // stride + 1
    ow = (w + 2 * pad - dila * (kw - 1) - 1) // stride + 1
    owc = ow * cout
    owc_pad = ((owc + 127) // 128) * 128          # lane-dense, 128-multiple
    noh = n * oh
    kk = kh * kw

    # Layout prep at the module boundary (tiny tensors, done once in XLA):
    # NCHW -> NHWC, expand channels by depth_multiplier, zero-pad spatially,
    # pre-shift the KK tap slabs, fold (OW, Cout) onto lanes, pad lanes to 128.
    # TODO(synk): for large inputs do the dm-expansion and the tap shifts
    # in-kernel (0/1 expand matmul + pltpu.roll) to keep HBM traffic at 1x, and
    # carry bf16 over HBM with f32 accumulation.
    xe = jnp.repeat(jnp.transpose(x, (0, 2, 3, 1)), dm, axis=3)     # (N,H,W,Cout)
    xe = jnp.pad(xe, ((0, 0), (pad, pad), (pad, pad), (0, 0))).astype(jnp.float32)
    taps = []
    for ih in range(kh):
        for iw in range(kw):
            sl = xe[:, ih * dila: ih * dila + oh, iw * dila: iw * dila + ow, :]
            taps.append(sl.reshape(noh, owc))
    xt = jnp.stack(taps, axis=0)                                    # (KK,NOH,OWC)
    xt = jnp.pad(xt, ((0, 0), (0, 0), (0, owc_pad - owc)))

    w2 = weight.reshape(cout, kk).T.astype(jnp.float32)             # (KK, Cout)
    wt = jnp.pad(jnp.tile(w2, (1, ow)), ((0, 0), (0, owc_pad - owc)))
    fold = jnp.pad(jnp.tile(jnp.eye(cout, dtype=jnp.float32), (ow, 1)),
                   ((0, owc_pad - owc), (0, 0)))                    # (OWCp, Cout)
    unfold = fold.T                                                 # (Cout, OWCp)
    g2 = gamma.reshape(1, cout).astype(jnp.float32)
    b2 = beta.reshape(1, cout).astype(jnp.float32)

    # VMEM budget including Pallas double-buffering (2x per input/output stream)
    # plus the f32 accumulator; tell Mosaic the limit explicitly.
    buf_bytes = 4 * (xt.size + wt.size + fold.size + unfold.size
                     + g2.size + b2.size + noh * owc_pad)
    vmem_need = 2 * buf_bytes + 4 * noh * owc_pad
    assert vmem_need < 12 * 1024 * 1024, "too large for single-block fused kernel"
    # TODO(synk): large N*H*W -> tiled two-pass grid with per-tile partial stats
    # (also unlocks v7x megacore via a 'parallel' leading axis); size tiles
    # against v7x's 64 MiB physical / 32 MiB scoped VMEM.

    kern = functools.partial(
        _dw_conv_bn_act_kernel, kk=kk,
        inv_count=1.0 / float(n * oh * ow), eps=float(eps))

    out2 = pl.pallas_call(
        kern,
        out_shape=jax.ShapeDtypeStruct((noh, owc_pad), jnp.float32),
        grid_spec=pltpu.PrefetchScalarGridSpec(
            num_scalar_prefetch=0,
            grid=(1,),
            in_specs=[
                pl.BlockSpec((kk, noh, owc_pad), lambda i: (0, 0, 0)),
                pl.BlockSpec((kk, owc_pad), lambda i: (0, 0)),
                pl.BlockSpec((owc_pad, cout), lambda i: (0, 0)),
                pl.BlockSpec((cout, owc_pad), lambda i: (0, 0)),
                pl.BlockSpec((1, cout), lambda i: (0, 0)),
                pl.BlockSpec((1, cout), lambda i: (0, 0)),
            ],
            out_specs=pl.BlockSpec((noh, owc_pad), lambda i: (0, 0)),
        ),
        compiler_params=pltpu.CompilerParams(
            dimension_semantics=("arbitrary",),
            vmem_limit_bytes=16 * 1024 * 1024),
    )(xt, wt, fold, unfold, g2, b2)

    # (NOH, OWC_pad) -> NCHW at the module boundary.
    # TODO(synk): drop this reshape/transpose if the consumer accepts
    # channels-last (saves one full HBM round-trip of the output).
    return out2[:, :owc].reshape(n, oh, ow, cout).transpose(0, 3, 1, 2)


# ---------------------------------- reference --------------------------------

def _reference(x, weight, gamma, beta, *, stride, pad, dila, eps, groups):
    y = lax.conv_general_dilated(
        x, weight, window_strides=(stride, stride),
        padding=((pad, pad), (pad, pad)),
        rhs_dilation=(dila, dila),
        dimension_numbers=("NCHW", "OIHW", "NCHW"),
        feature_group_count=groups)
    mean = jnp.mean(y, axis=(0, 2, 3), keepdims=True)
    var = jnp.mean((y - mean) ** 2, axis=(0, 2, 3), keepdims=True)  # biased
    yhat = (y - mean) / jnp.sqrt(var + eps)
    yhat = yhat * gamma.reshape(1, -1, 1, 1) + beta.reshape(1, -1, 1, 1)
    return jnp.maximum(yhat, 0.0)


# ------------------------------------ main ------------------------------------

if __name__ == "__main__":
    # DwConvBnAct2D(in_ch=4, depth_multiplier=2, ker_sz=3, stride=1, pad=1,
    #               act=nn.ReLU(), dila=1, eps=1e-8)
    N, CIN, H, W = 2, 4, 16, 16
    DM, KER, STRIDE, PAD, DILA = 2, 3, 1, 1, 1
    COUT = CIN * DM
    EPS = 1e-8

    key = jax.random.PRNGKey(0)
    kx, kwt, kg, kb = jax.random.split(key, 4)
    x = jax.random.normal(kx, (N, CIN, H, W), dtype=jnp.float32)
    weight = jax.random.normal(kwt, (COUT, 1, KER, KER), dtype=jnp.float32) * 0.3
    gamma = 1.0 + 0.1 * jax.random.normal(kg, (COUT,), dtype=jnp.float32)
    beta = 0.1 * jax.random.normal(kb, (COUT,), dtype=jnp.float32)

    out = dw_conv_bn_act_2d(x, weight, gamma, beta,
                            stride=STRIDE, pad=PAD, dila=DILA, eps=EPS)
    out = jax.block_until_ready(out)

    ref = _reference(x, weight, gamma, beta, stride=STRIDE, pad=PAD,
                     dila=DILA, eps=EPS, groups=CIN)
    assert out.shape == (N, COUT, H, W)
    assert jnp.allclose(out, ref, atol=1e-4, rtol=1e-4), \
        float(jnp.max(jnp.abs(out - ref)))

    print("KERNEL_OK")
</pallas_src>

<mosaic_0001>
module attributes {stable_mosaic.version = 11 : i64} {
  func.func @_dw_conv_bn_act_kernel(%arg0: i32, %arg1: memref<9x32x128xf32, #tpu.memory_space<vmem>>, %arg2: memref<9x128xf32, #tpu.memory_space<vmem>>, %arg3: memref<128x8xf32, #tpu.memory_space<vmem>>, %arg4: memref<8x128xf32, #tpu.memory_space<vmem>>, %arg5: memref<1x8xf32, #tpu.memory_space<vmem>>, %arg6: memref<1x8xf32, #tpu.memory_space<vmem>>, %arg7: memref<32x128xf32, #tpu.memory_space<vmem>>) attributes {dimension_semantics = [#tpu.dimension_semantics<arbitrary>], iteration_bounds = array<i64: 1>, scalar_prefetch = 0 : i64, scratch_operands = 0 : i64, tpu.core_type = #tpu.core_type<tc>, window_params = [{pipeline_mode = #tpu.pipeline_mode<synchronous>, transform_indices = @transform_0, window_bounds = array<i64: 9, 32, 128>}, {pipeline_mode = #tpu.pipeline_mode<synchronous>, transform_indices = @transform_1, window_bounds = array<i64: 9, 128>}, {pipeline_mode = #tpu.pipeline_mode<synchronous>, transform_indices = @transform_2, window_bounds = array<i64: 128, 8>}, {pipeline_mode = #tpu.pipeline_mode<synchronous>, transform_indices = @transform_3, window_bounds = array<i64: 8, 128>}, {pipeline_mode = #tpu.pipeline_mode<synchronous>, transform_indices = @transform_4, window_bounds = array<i64: 1, 8>}, {pipeline_mode = #tpu.pipeline_mode<synchronous>, transform_indices = @transform_5, window_bounds = array<i64: 1, 8>}, {pipeline_mode = #tpu.pipeline_mode<synchronous>, transform_indices = @transform_6, window_bounds = array<i64: 32, 128>}]} {
    %c0 = arith.constant 0 : index
    %c0_0 = arith.constant 0 : index
    %c0_1 = arith.constant 0 : index
    %0 = vector.load %arg1[%c0, %c0_0, %c0_1] : memref<9x32x128xf32, #tpu.memory_space<vmem>>, vector<1x32x128xf32>
    %1 = vector.shape_cast %0 : vector<1x32x128xf32> to vector<32x128xf32>
    %c0_2 = arith.constant 0 : index
    %c0_3 = arith.constant 0 : index
    %2 = vector.load %arg2[%c0_2, %c0_3] : memref<9x128xf32, #tpu.memory_space<vmem>>, vector<1x128xf32>
    %3 = vector.broadcast %2 : vector<1x128xf32> to vector<32x128xf32>
    %4 = arith.mulf %1, %3 : vector<32x128xf32>
    %c1 = arith.constant 1 : index
    %c0_4 = arith.constant 0 : index
    %c0_5 = arith.constant 0 : index
    %5 = vector.load %arg1[%c1, %c0_4, %c0_5] : memref<9x32x128xf32, #tpu.memory_space<vmem>>, vector<1x32x128xf32>
    %6 = vector.shape_cast %5 : vector<1x32x128xf32> to vector<32x128xf32>
    %c1_6 = arith.constant 1 : index
    %c0_7 = arith.constant 0 : index
    %7 = vector.load %arg2[%c1_6, %c0_7] : memref<9x128xf32, #tpu.memory_space<vmem>>, vector<1x128xf32>
    %8 = vector.broadcast %7 : vector<1x128xf32> to vector<32x128xf32>
    %9 = arith.mulf %6, %8 : vector<32x128xf32>
    %10 = arith.addf %4, %9 : vector<32x128xf32>
    %c2 = arith.constant 2 : index
    %c0_8 = arith.constant 0 : index
    %c0_9 = arith.constant 0 : index
    %11 = vector.load %arg1[%c2, %c0_8, %c0_9] : memref<9x32x128xf32, #tpu.memory_space<vmem>>, vector<1x32x128xf32>
    %12 = vector.shape_cast %11 : vector<1x32x128xf32> to vector<32x128xf32>
    %c2_10 = arith.constant 2 : index
    %c0_11 = arith.constant 0 : index
    %13 = vector.load %arg2[%c2_10, %c0_11] : memref<9x128xf32, #tpu.memory_space<vmem>>, vector<1x128xf32>
    %14 = vector.broadcast %13 : vector<1x128xf32> to vector<32x128xf32>
    %15 = arith.mulf %12, %14 : vector<32x128xf32>
    %16 = arith.addf %10, %15 : vector<32x128xf32>
    %c3 = arith.constant 3 : index
    %c0_12 = arith.constant 0 : index
    %c0_13 = arith.constant 0 : index
    %17 = vector.load %arg1[%c3, %c0_12, %c0_13] : memref<9x32x128xf32, #tpu.memory_space<vmem>>, vector<1x32x128xf32>
    %18 = vector.shape_cast %17 : vector<1x32x128xf32> to vector<32x128xf32>
    %c3_14 = arith.constant 3 : index
    %c0_15 = arith.constant 0 : index
    %19 = vector.load %arg2[%c3_14, %c0_15] : memref<9x128xf32, #tpu.memory_space<vmem>>, vector<1x128xf32>
    %20 = vector.broadcast %19 : vector<1x128xf32> to vector<32x128xf32>
    %21 = arith.mulf %18, %20 : vector<32x128xf32>
    %22 = arith.addf %16, %21 : vector<32x128xf32>
    %c4 = arith.constant 4 : index
    %c0_16 = arith.constant 0 : index
    %c0_17 = arith.constant 0 : index
    %23 = vector.load %arg1[%c4, %c0_16, %c0_17] : memref<9x32x128xf32, #tpu.memory_space<vmem>>, vector<1x32x128xf32>
    %24 = vector.shape_cast %23 : vector<1x32x128xf32> to vector<32x128xf32>
    %c4_18 = arith.constant 4 : index
    %c0_19 = arith.constant 0 : index
    %25 = vector.load %arg2[%c4_18, %c0_19] : memref<9x128xf32, #tpu.memory_space<vmem>>, vector<1x128xf32>
    %26 = vector.broadcast %25 : vector<1x128xf32> to vector<32x128xf32>
    %27 = arith.mulf %24, %26 : vector<32x128xf32>
    %28 = arith.addf %22, %27 : vector<32x128xf32>
    %c5 = arith.constant 5 : index
    %c0_20 = arith.constant 0 : index
    %c0_21 = arith.constant 0 : index
    %29 = vector.load %arg1[%c5, %c0_20, %c0_21] : memref<9x32x128xf32, #tpu.memory_space<vmem>>, vector<1x32x128xf32>
    %30 = vector.shape_cast %29 : vector<1x32x128xf32> to vector<32x128xf32>
    %c5_22 = arith.constant 5 : index
    %c0_23 = arith.constant 0 : index
    %31 = vector.load %arg2[%c5_22, %c0_23] : memref<9x128xf32, #tpu.memory_space<vmem>>, vector<1x128xf32>
    %32 = vector.broadcast %31 : vector<1x128xf32> to vector<32x128xf32>
    %33 = arith.mulf %30, %32 : vector<32x128xf32>
    %34 = arith.addf %28, %33 : vector<32x128xf32>
    %c6 = arith.constant 6 : index
    %c0_24 = arith.constant 0 : index
    %c0_25 = arith.constant 0 : index
    %35 = vector.load %arg1[%c6, %c0_24, %c0_25] : memref<9x32x128xf32, #tpu.memory_space<vmem>>, vector<1x32x128xf32>
    %36 = vector.shape_cast %35 : vector<1x32x128xf32> to vector<32x128xf32>
    %c6_26 = arith.constant 6 : index
    %c0_27 = arith.constant 0 : index
    %37 = vector.load %arg2[%c6_26, %c0_27] : memref<9x128xf32, #tpu.memory_space<vmem>>, vector<1x128xf32>
    %38 = vector.broadcast %37 : vector<1x128xf32> to vector<32x128xf32>
    %39 = arith.mulf %36, %38 : vector<32x128xf32>
    %40 = arith.addf %34, %39 : vector<32x128xf32>
    %c7 = arith.constant 7 : index
    %c0_28 = arith.constant 0 : index
    %c0_29 = arith.constant 0 : index
    %41 = vector.load %arg1[%c7, %c0_28, %c0_29] : memref<9x32x128xf32, #tpu.memory_space<vmem>>, vector<1x32x128xf32>
    %42 = vector.shape_cast %41 : vector<1x32x128xf32> to vector<32x128xf32>
    %c7_30 = arith.constant 7 : index
    %c0_31 = arith.constant 0 : index
    %43 = vector.load %arg2[%c7_30, %c0_31] : memref<9x128xf32, #tpu.memory_space<vmem>>, vector<1x128xf32>
    %44 = vector.broadcast %43 : vector<1x128xf32> to vector<32x128xf32>
    %45 = arith.mulf %42, %44 : vector<32x128xf32>
    %46 = arith.addf %40, %45 : vector<32x128xf32>
    %c8 = arith.constant 8 : index
    %c0_32 = arith.constant 0 : index
    %c0_33 = arith.constant 0 : index
    %47 = vector.load %arg1[%c8, %c0_32, %c0_33] : memref<9x32x128xf32, #tpu.memory_space<vmem>>, vector<1x32x128xf32>
    %48 = vector.shape_cast %47 : vector<1x32x128xf32> to vector<32x128xf32>
    %c8_34 = arith.constant 8 : index
    %c0_35 = arith.constant 0 : index
    %49 = vector.load %arg2[%c8_34, %c0_35] : memref<9x128xf32, #tpu.memory_space<vmem>>, vector<1x128xf32>
    %50 = vector.broadcast %49 : vector<1x128xf32> to vector<32x128xf32>
    %51 = arith.mulf %48, %50 : vector<32x128xf32>
    %52 = arith.addf %46, %51 : vector<32x128xf32>
    %cst = arith.constant dense<0.000000e+00> : vector<128xf32>
    %53 = vector.multi_reduction <add>, %52, %cst [0] : vector<32x128xf32> to vector<128xf32>
    %54 = vector.shape_cast %53 : vector<128xf32> to vector<1x128xf32>
    %55 = arith.mulf %52, %52 : vector<32x128xf32>
    %cst_36 = arith.constant dense<0.000000e+00> : vector<128xf32>
    %56 = vector.multi_reduction <add>, %55, %cst_36 [0] : vector<32x128xf32> to vector<128xf32>
    %57 = vector.shape_cast %56 : vector<128xf32> to vector<1x128xf32>
    %58 = tpu.concatenate %54, %57 in 0 : vector<1x128xf32>, vector<1x128xf32> -> vector<2x128xf32>
    %c0_37 = arith.constant 0 : index
    %c0_38 = arith.constant 0 : index
    %59 = vector.load %arg3[%c0_37, %c0_38] : memref<128x8xf32, #tpu.memory_space<vmem>>, vector<128x8xf32>
    %cst_39 = arith.constant dense<0.000000e+00> : vector<2x8xf32>
    %60 = tpu.matmul %58, %59, %cst_39 {dimension_numbers = #tpu.dot_dimension_numbers<[1], [0], [0], [1], [0, 0, 1, 1], [], []>} : vector<2x128xf32>, vector<128x8xf32>, vector<2x8xf32> -> vector<2x8xf32>
    %61 = vector.extract_strided_slice %60 {offsets = [0, 0], sizes = [1, 8], strides = [1, 1]} : vector<2x8xf32> to vector<1x8xf32>
    %cst_40 = arith.constant 0.001953125 : f32
    %62 = vector.broadcast %cst_40 : f32 to vector<1x8xf32>
    %63 = arith.mulf %61, %62 : vector<1x8xf32>
    %64 = vector.extract_strided_slice %60 {offsets = [1, 0], sizes = [1, 8], strides = [1, 1]} : vector<2x8xf32> to vector<1x8xf32>
    %cst_41 = arith.constant 0.001953125 : f32
    %65 = vector.broadcast %cst_41 : f32 to vector<1x8xf32>
    %66 = arith.mulf %64, %65 : vector<1x8xf32>
    %67 = arith.mulf %63, %63 : vector<1x8xf32>
    %68 = arith.subf %66, %67 : vector<1x8xf32>
    %cst_42 = arith.constant 0.000000e+00 : f32
    %69 = vector.broadcast %cst_42 : f32 to vector<1x8xf32>
    %70 = arith.maximumf %68, %69 : vector<1x8xf32>
    %c0_43 = arith.constant 0 : index
    %c0_44 = arith.constant 0 : index
    %71 = vector.load %arg5[%c0_43, %c0_44] : memref<1x8xf32, #tpu.memory_space<vmem>>, vector<1x8xf32>
    %cst_45 = arith.constant 9.99999993E-9 : f32
    %72 = vector.broadcast %cst_45 : f32 to vector<1x8xf32>
    %73 = arith.addf %70, %72 : vector<1x8xf32>
    %74 = math.rsqrt %73 : vector<1x8xf32>
    %75 = arith.mulf %71, %74 : vector<1x8xf32>
    %c0_46 = arith.constant 0 : index
    %c0_47 = arith.constant 0 : index
    %76 = vector.load %arg6[%c0_46, %c0_47] : memref<1x8xf32, #tpu.memory_space<vmem>>, vector<1x8xf32>
    %77 = arith.mulf %63, %75 : vector<1x8xf32>
    %78 = arith.subf %76, %77 : vector<1x8xf32>
    %79 = tpu.concatenate %75, %78 in 0 : vector<1x8xf32>, vector<1x8xf32> -> vector<2x8xf32>
    %c0_48 = arith.constant 0 : index
    %c0_49 = arith.constant 0 : index
    %80 = vector.load %arg4[%c0_48, %c0_49] : memref<8x128xf32, #tpu.memory_space<vmem>>, vector<8x128xf32>
    %cst_50 = arith.constant dense<0.000000e+00> : vector<2x128xf32>
    %81 = tpu.matmul %79, %80, %cst_50 {dimension_numbers = #tpu.dot_dimension_numbers<[1], [0], [0], [1], [0, 0, 1, 1], [], []>} : vector<2x8xf32>, vector<8x128xf32>, vector<2x128xf32> -> vector<2x128xf32>
    %82 = vector.extract_strided_slice %81 {offsets = [0, 0], sizes = [1, 128], strides = [1, 1]} : vector<2x128xf32> to vector<1x128xf32>
    %83 = vector.broadcast %82 : vector<1x128xf32> to vector<32x128xf32>
    %84 = arith.mulf %52, %83 : vector<32x128xf32>
    %85 = vector.extract_strided_slice %81 {offsets = [1, 0], sizes = [1, 128], strides = [1, 1]} : vector<2x128xf32> to vector<1x128xf32>
    %86 = vector.broadcast %85 : vector<1x128xf32> to vector<32x128xf32>
    %87 = arith.addf %84, %86 : vector<32x128xf32>
    %cst_51 = arith.constant 0.000000e+00 : f32
    %88 = vector.broadcast %cst_51 : f32 to vector<32x128xf32>
    %89 = arith.maximumf %87, %88 : vector<32x128xf32>
    %c0_52 = arith.constant 0 : index
    %c0_53 = arith.constant 0 : index
    %90 = vector.load %arg7[%c0_52, %c0_53] : memref<32x128xf32, #tpu.memory_space<vmem>>, vector<32x128xf32>
    tpu.vector_store %arg7[%c0_52, %c0_53], %89 {strides = array<i32>} : memref<32x128xf32, #tpu.memory_space<vmem>>, vector<32x128xf32>,
    return
  }
  func.func @transform_0(%arg0: i32) -> (i32, i32, i32) {
    %c0_i32 = arith.constant 0 : i32
    %c0_i32_0 = arith.constant 0 : i32
    %c0_i32_1 = arith.constant 0 : i32
    %c0_i32_2 = arith.constant 0 : i32
    return %c0_i32, %c0_i32_0, %c0_i32_1 : i32, i32, i32
  }
  func.func @transform_1(%arg0: i32) -> (i32, i32) {
    %c0_i32 = arith.constant 0 : i32
    %c0_i32_0 = arith.constant 0 : i32
    %c0_i32_1 = arith.constant 0 : i32
    return %c0_i32, %c0_i32_0 : i32, i32
  }
  func.func @transform_2(%arg0: i32) -> (i32, i32) {
    %c0_i32 = arith.constant 0 : i32
    %c0_i32_0 = arith.constant 0 : i32
    %c0_i32_1 = arith.constant 0 : i32
    return %c0_i32, %c0_i32_0 : i32, i32
  }
  func.func @transform_3(%arg0: i32) -> (i32, i32) {
    %c0_i32 = arith.constant 0 : i32
    %c0_i32_0 = arith.constant 0 : i32
    %c0_i32_1 = arith.constant 0 : i32
    return %c0_i32, %c0_i32_0 : i32, i32
  }
  func.func @transform_4(%arg0: i32) -> (i32, i32) {
    %c0_i32 = arith.constant 0 : i32
    %c0_i32_0 = arith.constant 0 : i32
    %c0_i32_1 = arith.constant 0 : i32
    return %c0_i32, %c0_i32_0 : i32, i32
  }
  func.func @transform_5(%arg0: i32) -> (i32, i32) {
    %c0_i32 = arith.constant 0 : i32
    %c0_i32_0 = arith.constant 0 : i32
    %c0_i32_1 = arith.constant 0 : i32
    return %c0_i32, %c0_i32_0 : i32, i32
  }
  func.func @transform_6(%arg0: i32) -> (i32, i32) {
    %c0_i32 = arith.constant 0 : i32
    %c0_i32_0 = arith.constant 0 : i32
    %c0_i32_1 = arith.constant 0 : i32
    return %c0_i32, %c0_i32_0 : i32, i32
  }
}

</mosaic_0001>

<llo_original>
// kernel: tpu_custom_call.1
$region0: #{tpu_custom_call.1}
  #allocation0 [shape = 'u32[]', space=smem, size = 0x4, offset = 0x4, fixed_abs, tag = 'smem constant byte address 0x4 - core index']
  #allocation1 [shape = 'u32[144,128]{1,0:T(1,128)}', space=vmem, size = 0x12000, scoped, tag = 'internal scratch']
  %s0 = inlined_call_operand.hbm [shape: f32[9,32,128], index: 0, kind: input, shape index: {}]
  %s1 = inlined_call_operand.vmem [shape: f32[9,128], index: 1, kind: input, shape index: {}]
  %s2 = inlined_call_operand.vmem [shape: f32[128,8], index: 2, kind: input, shape index: {}]
  %s3 = inlined_call_operand.vmem [shape: f32[8,128], index: 3, kind: input, shape index: {}]
  %s4 = inlined_call_operand.vmem [shape: f32[1,8], index: 4, kind: input, shape index: {}]
  %s5 = inlined_call_operand.vmem [shape: f32[1,8], index: 5, kind: input, shape index: {}]
  %s6 = inlined_call_operand.hbm [shape: f32[32,128], index: 6, kind: output, shape index: {}]
  %s7 = sld [smem:[#allocation0]]
  $region38: #{tpu_custom_call.1} parent=0
    _
  %s9 = ssub.s32 1, %s7
  %s10 = scalar_select 0, %s9, %s7
  $region1: #{tpu_custom_call.1} parent=0
    #allocation2 [shape = 'u8[147456]{0}', space=vmem, size = 0x24000, scoped, tag = 'input window, operand 0, single buffered']
    #allocation3 [shape = 's32[1]{0}', space=sflag, size = 0x4, scoped, tag = 'scoped memory for tpu_custom_call.1']
    #allocation4 [shape = 's32[1]{0}', space=sflag, size = 0x4, scoped, tag = 'scoped memory for tpu_custom_call.1']
    #allocation5 [shape = 'u8[16384]{0}', space=vmem, size = 0x4000, scoped, tag = 'output window, operand 0, single buffered']
    %11 = vsyncpa [#allocation3], 0
    %12 = vsyncpa [#allocation4], 0
    // Predicated region
    $region2: #{tpu_custom_call.1} parent=1 // pred_check
      _
    $region3: #{tpu_custom_call.1} parent=1 // pred_check_branch
      %14 = sbr.rel (0) target = $region5
    $region4: #{tpu_custom_call.1} parent=1 // pred_region
      %s16 = ssub.s32 4608, 4608
      %17 = vsyncadd [#allocation3], %s16
      %s18 = sshll.u32 [#allocation2], 4
      %s19 = int_to_ptr.vmem [resolvable:$true] %s18
      %24 = dma.hbm_to_vmem [thread:$0]  %s0, 4608, %s19, [#allocation3], 128, 128, 8
    $region5: #{tpu_custom_call.1} parent=1 // pred_fallthru
      _
    // Predicated region
    $region6: #{tpu_custom_call.1} parent=1 // pred_check
      _
    $region7: #{tpu_custom_call.1} parent=1 // pred_check_branch
      %26 = sbr.rel (0) target = $region9
    $region8: #{tpu_custom_call.1} parent=1 // pred_region
      _
    $region9: #{tpu_custom_call.1} parent=1 // pred_fallthru
      _
    // Predicated region
    $region10: #{tpu_custom_call.1} parent=1 // pred_check
      _
    $region11: #{tpu_custom_call.1} parent=1 // pred_check_branch
      %28 = sbr.rel (0) target = $region13
    $region12: #{tpu_custom_call.1} parent=1 // pred_region
      _
    $region13: #{tpu_custom_call.1} parent=1 // pred_fallthru
      _
    // Predicated region
    $region14: #{tpu_custom_call.1} parent=1 // pred_check
      _
    $region15: #{tpu_custom_call.1} parent=1 // pred_check_branch
      %30 = sbr.rel (0) target = $region17
    $region16: #{tpu_custom_call.1} parent=1 // pred_region
      _
    $region17: #{tpu_custom_call.1} parent=1 // pred_fallthru
      _
    // Predicated region
    $region18: #{tpu_custom_call.1} parent=1 // pred_check
      _
    $region19: #{tpu_custom_call.1} parent=1 // pred_check_branch
      %32 = sbr.rel (0) target = $region21
    $region20: #{tpu_custom_call.1} parent=1 // pred_region
      _
    $region21: #{tpu_custom_call.1} parent=1 // pred_fallthru
      _
    // Predicated region
    $region22: #{tpu_custom_call.1} parent=1 // pred_check
      _
    $region23: #{tpu_custom_call.1} parent=1 // pred_check_branch
      %34 = sbr.rel (0) target = $region25
    $region24: #{tpu_custom_call.1} parent=1 // pred_region
      _
    $region25: #{tpu_custom_call.1} parent=1 // pred_fallthru
      _
    // Predicated region
    $region26: #{tpu_custom_call.1} parent=1 // pred_check
      _
    $region27: #{tpu_custom_call.1} parent=1 // pred_check_branch
      %36 = sbr.rel (0) target = $region29
    $region28: #{tpu_custom_call.1} parent=1 // pred_region
      %37 = dma.done [#allocation3], 4608
    $region29: #{tpu_custom_call.1} parent=1 // pred_fallthru
      _
    %v38 = vld [vmem:[#allocation2] sm:$0xff]
    %v39 = vld [vmem:[#allocation2 + $0x8] sm:$0xff]
    %v40 = vld [vmem:[#allocation2 + $0x10] sm:$0xff]
    %v41 = vld [vmem:[#allocation2 + $0x18] sm:$0xff]
    %v42 = vld [vmem:[%s1] sm:$0x1]
    %v43 = vlaneseq
    %v44 = vshrl.u32 %v43, 7
    %v45 = vsub.s32 0, %v44
    %v46 = vrot.slane %v42, %v45
    %v47 = vmul.f32 %v38, %v46
    %v48 = vmul.f32 %v39, %v46
    %v49 = vmul.f32 %v40, %v46
    %v50 = vmul.f32 %v41, %v46
    %s51 = scalar_lea.vmem [#allocation2], 32
    %v52 = vld [vmem:[%s51] sm:$0xff]
    %v53 = vld [vmem:[%s51 + $0x8] sm:$0xff]
    %v54 = vld [vmem:[%s51 + $0x10] sm:$0xff]
    %v55 = vld [vmem:[%s51 + $0x18] sm:$0xff]
    %v56 = vld [vmem:[%s1 + $0x1] sm:$0x1]
    %v57 = vlaneseq
    %v58 = vshrl.u32 %v57, 7
    %v59 = vsub.s32 0, %v58
    %v60 = vrot.slane %v56, %v59
    %v61 = vmul.f32 %v52, %v60
    %v62 = vmul.f32 %v53, %v60
    %v63 = vmul.f32 %v54, %v60
    %v64 = vmul.f32 %v55, %v60
    %v65 = vadd.f32 %v47, %v61
    %v66 = vadd.f32 %v48, %v62
    %v67 = vadd.f32 %v49, %v63
    %v68 = vadd.f32 %v50, %v64
    %s69 = scalar_lea.vmem [#allocation2], 64
    %v70 = vld [vmem:[%s69] sm:$0xff]
    %v71 = vld [vmem:[%s69 + $0x8] sm:$0xff]
    %v72 = vld [vmem:[%s69 + $0x10] sm:$0xff]
    %v73 = vld [vmem:[%s69 + $0x18] sm:$0xff]
    %v74 = vld [vmem:[%s1 + $0x2] sm:$0x1]
    %v75 = vlaneseq
    %v76 = vshrl.u32 %v75, 7
    %v77 = vsub.s32 0, %v76
    %v78 = vrot.slane %v74, %v77
    %v79 = vmul.f32 %v70, %v78
    %v80 = vmul.f32 %v71, %v78
    %v81 = vmul.f32 %v72, %v78
    %v82 = vmul.f32 %v73, %v78
    %v83 = vadd.f32 %v65, %v79
    %v84 = vadd.f32 %v66, %v80
    %v85 = vadd.f32 %v67, %v81
    %v86 = vadd.f32 %v68, %v82
    %s87 = scalar_lea.vmem [#allocation2], 96
    %v88 = vld [vmem:[%s87] sm:$0xff]
    %v89 = vld [vmem:[%s87 + $0x8] sm:$0xff]
    %v90 = vld [vmem:[%s87 + $0x10] sm:$0xff]
    %v91 = vld [vmem:[%s87 + $0x18] sm:$0xff]
    %v92 = vld [vmem:[%s1 + $0x3] sm:$0x1]
    %v93 = vlaneseq
    %v94 = vshrl.u32 %v93, 7
    %v95 = vsub.s32 0, %v94
    %v96 = vrot.slane %v92, %v95
    %v97 = vmul.f32 %v88, %v96
    %v98 = vmul.f32 %v89, %v96
    %v99 = vmul.f32 %v90, %v96
    %v100 = vmul.f32 %v91, %v96
    %v101 = vadd.f32 %v83, %v97
    %v102 = vadd.f32 %v84, %v98
    %v103 = vadd.f32 %v85, %v99
    %v104 = vadd.f32 %v86, %v100
    %s105 = scalar_lea.vmem [#allocation2], 128
    %v106 = vld [vmem:[%s105] sm:$0xff]
    %v107 = vld [vmem:[%s105 + $0x8] sm:$0xff]
    %v108 = vld [vmem:[%s105 + $0x10] sm:$0xff]
    %v109 = vld [vmem:[%s105 + $0x18] sm:$0xff]
    %v110 = vld [vmem:[%s1 + $0x4] sm:$0x1]
    %v111 = vlaneseq
    %v112 = vshrl.u32 %v111, 7
    %v113 = vsub.s32 0, %v112
    %v114 = vrot.slane %v110, %v113
    %v115 = vmul.f32 %v106, %v114
    %v116 = vmul.f32 %v107, %v114
    %v117 = vmul.f32 %v108, %v114
    %v118 = vmul.f32 %v109, %v114
    %v119 = vadd.f32 %v101, %v115
    %v120 = vadd.f32 %v102, %v116
    %v121 = vadd.f32 %v103, %v117
    %v122 = vadd.f32 %v104, %v118
    %s123 = scalar_lea.vmem [#allocation2], 160
    %v124 = vld [vmem:[%s123] sm:$0xff]
    %v125 = vld [vmem:[%s123 + $0x8] sm:$0xff]
    %v126 = vld [vmem:[%s123 + $0x10] sm:$0xff]
    %v127 = vld [vmem:[%s123 + $0x18] sm:$0xff]
    %v128 = vld [vmem:[%s1 + $0x5] sm:$0x1]
    %v129 = vlaneseq
    %v130 = vshrl.u32 %v129, 7
    %v131 = vsub.s32 0, %v130
    %v132 = vrot.slane %v128, %v131
    %v133 = vmul.f32 %v124, %v132
    %v134 = vmul.f32 %v125, %v132
    %v135 = vmul.f32 %v126, %v132
    %v136 = vmul.f32 %v127, %v132
    %v137 = vadd.f32 %v119, %v133
    %v138 = vadd.f32 %v120, %v134
    %v139 = vadd.f32 %v121, %v135
    %v140 = vadd.f32 %v122, %v136
    %s141 = scalar_lea.vmem [#allocation2], 192
    %v142 = vld [vmem:[%s141] sm:$0xff]
    %v143 = vld [vmem:[%s141 + $0x8] sm:$0xff]
    %v144 = vld [vmem:[%s141 + $0x10] sm:$0xff]
    %v145 = vld [vmem:[%s141 + $0x18] sm:$0xff]
    %v146 = vld [vmem:[%s1 + $0x6] sm:$0x1]
    %v147 = vlaneseq
    %v148 = vshrl.u32 %v147, 7
    %v149 = vsub.s32 0, %v148
    %v150 = vrot.slane %v146, %v149
    %v151 = vmul.f32 %v142, %v150
    %v152 = vmul.f32 %v143, %v150
    %v153 = vmul.f32 %v144, %v150
    %v154 = vmul.f32 %v145, %v150
    %v155 = vadd.f32 %v137, %v151
    %v156 = vadd.f32 %v138, %v152
    %v157 = vadd.f32 %v139, %v153
    %v158 = vadd.f32 %v140, %v154
    %s159 = scalar_lea.vmem [#allocation2], 224
    %v160 = vld [vmem:[%s159] sm:$0xff]
    %v161 = vld [vmem:[%s159 + $0x8] sm:$0xff]
    %v162 = vld [vmem:[%s159 + $0x10] sm:$0xff]
    %v163 = vld [vmem:[%s159 + $0x18] sm:$0xff]
    %v164 = vld [vmem:[%s1 + $0x7] sm:$0x1]
    %v165 = vlaneseq
    %v166 = vshrl.u32 %v165, 7
    %v167 = vsub.s32 0, %v166
    %v168 = vrot.slane %v164, %v167
    %v169 = vmul.f32 %v160, %v168
    %v170 = vmul.f32 %v161, %v168
    %v171 = vmul.f32 %v162, %v168
    %v172 = vmul.f32 %v163, %v168
    %v173 = vadd.f32 %v155, %v169
    %v174 = vadd.f32 %v156, %v170
    %v175 = vadd.f32 %v157, %v171
    %v176 = vadd.f32 %v158, %v172
    %s177 = scalar_lea.vmem [#allocation2], 256
    %v178 = vld [vmem:[%s177] sm:$0xff]
    %v179 = vld [vmem:[%s177 + $0x8] sm:$0xff]
    %v180 = vld [vmem:[%s177 + $0x10] sm:$0xff]
    %v181 = vld [vmem:[%s177 + $0x18] sm:$0xff]
    %v182 = vld [vmem:[%s1 + $0x8] sm:$0x1]
    %v183 = vlaneseq
    %v184 = vshrl.u32 %v183, 7
    %v185 = vsub.s32 0, %v184
    %v186 = vrot.slane %v182, %v185
    %v187 = vmul.f32 %v178, %v186
    %v188 = vmul.f32 %v179, %v186
    %v189 = vmul.f32 %v180, %v186
    %v190 = vmul.f32 %v181, %v186
    %v191 = vadd.f32 %v173, %v187
    %v192 = vadd.f32 %v174, %v188
    %v193 = vadd.f32 %v175, %v189
    %v194 = vadd.f32 %v176, %v190
    %v195 = vadd.f32 %v191, %v192
    %v196 = vadd.f32 %v195, %v193
    %v197 = vadd.f32 %v196, %v194
    %v198 = vrot.slane %v197, 4
    %v199 = vadd.f32 %v197, %v198
    %v200 = vrot.slane %v199, 2
    %v201 = vadd.f32 %v199, %v200
    %v202 = vrot.slane %v201, 1
    %v203 = vadd.f32 %v201, %v202
    %v204 = vmul.f32 %v191, %v191
    %v205 = vmul.f32 %v192, %v192
    %v206 = vmul.f32 %v193, %v193
    %v207 = vmul.f32 %v194, %v194
    %v208 = vadd.f32 %v204, %v205
    %v209 = vadd.f32 %v208, %v206
    %v210 = vadd.f32 %v209, %v207
    %v211 = vrot.slane %v210, 4
    %v212 = vadd.f32 %v210, %v211
    %v213 = vrot.slane %v212, 2
    %v214 = vadd.f32 %v212, %v213
    %v215 = vrot.slane %v214, 1
    %v216 = vadd.f32 %v214, %v215
    %vm217 = vcmask 1040384
    %v218 = vsel %vm217, %v203, %v216
    %v219 = vld [vmem:[%s2] sm:$0xff]
    %v220 = vld [vmem:[%s2 + $0x8] sm:$0xff]
    %v221 = vld [vmem:[%s2 + $0x10] sm:$0xff]
    %v222 = vld [vmem:[%s2 + $0x18] sm:$0xff]
    %v223 = vld [vmem:[%s2 + $0x20] sm:$0xff]
    %v224 = vld [vmem:[%s2 + $0x28] sm:$0xff]
    %v225 = vld [vmem:[%s2 + $0x30] sm:$0xff]
    %v226 = vld [vmem:[%s2 + $0x38] sm:$0xff]
    %v227 = vld [vmem:[%s2 + $0x40] sm:$0xff]
    %v228 = vld [vmem:[%s2 + $0x48] sm:$0xff]
    %v229 = vld [vmem:[%s2 + $0x50] sm:$0xff]
    %v230 = vld [vmem:[%s2 + $0x58] sm:$0xff]
    %v231 = vld [vmem:[%s2 + $0x60] sm:$0xff]
    %v232 = vld [vmem:[%s2 + $0x68] sm:$0xff]
    %v233 = vld [vmem:[%s2 + $0x70] sm:$0xff]
    %v234 = vld [vmem:[%s2 + $0x78] sm:$0xff]
    %235 = vmatprep.subr.mxu0 0.0
    %236 = vmatpush1.msra.mxu0 %v219
    %237 = vmatprep.subr.mxu0 0.0
    %238 = vmatpush1.msra.mxu0 %v220
    %239 = vmatprep.subr.mxu0 0.0
    %240 = vmatpush1.msra.mxu0 %v221
    %241 = vmatprep.subr.mxu0 0.0
    %242 = vmatpush1.msra.mxu0 %v222
    %243 = vmatprep.subr.mxu0 0.0
    %244 = vmatpush1.msra.mxu0 %v223
    %245 = vmatprep.subr.mxu0 0.0
    %246 = vmatpush1.msra.mxu0 %v224
    %247 = vmatprep.subr.mxu0 0.0
    %248 = vmatpush1.msra.mxu0 %v225
    %249 = vmatprep.subr.mxu0 0.0
    %250 = vmatpush1.msra.mxu0 %v226
    %251 = vmatprep.subr.mxu0 0.0
    %252 = vmatpush1.msra.mxu0 %v227
    %253 = vmatprep.subr.mxu0 0.0
    %254 = vmatpush1.msra.mxu0 %v228
    %255 = vmatprep.subr.mxu0 0.0
    %256 = vmatpush1.msra.mxu0 %v229
    %257 = vmatprep.subr.mxu0 0.0
    %258 = vmatpush1.msra.mxu0 %v230
    %259 = vmatprep.subr.mxu0 0.0
    %260 = vmatpush1.msra.mxu0 %v231
    %261 = vmatprep.subr.mxu0 0.0
    %262 = vmatpush1.msra.mxu0 %v232
    %263 = vmatprep.subr.mxu0 0.0
    %264 = vmatpush1.msra.mxu0 %v233
    %265 = vmatprep.subr.mxu0 0.0
    %266 = vmatpush1.msra.mxu0 %v234
    %267 = vmatprep.subr.mxu0 0.0
    %268 = vmatpush1.msra.mxu0 0.0
    %269 = vmatprep.subr.mxu0 0.0
    %270 = vmatpush1.msra.mxu0 0.0
    %271 = vmatprep.subr.mxu0 0.0
    %272 = vmatpush1.msra.mxu0 0.0
    %273 = vmatprep.subr.mxu0 0.0
    %274 = vmatpush1.msra.mxu0 0.0
    %275 = vmatprep.subr.mxu0 0.0
    %276 = vmatpush1.msra.mxu0 0.0
    %277 = vmatprep.subr.mxu0 0.0
    %278 = vmatpush1.msra.mxu0 0.0
    %279 = vmatprep.subr.mxu0 0.0
    %280 = vmatpush1.msra.mxu0 0.0
    %281 = vmatprep.subr.mxu0 0.0
    %282 = vmatpush1.msra.mxu0 0.0
    %283 = vmatprep.subr.mxu0 0.0
    %284 = vmatpush1.msra.mxu0 0.0
    %285 = vmatprep.subr.mxu0 0.0
    %286 = vmatpush1.msra.mxu0 0.0
    %287 = vmatprep.subr.mxu0 0.0
    %288 = vmatpush1.msra.mxu0 0.0
    %289 = vmatprep.subr.mxu0 0.0
    %290 = vmatpush1.msra.mxu0 0.0
    %291 = vmatprep.subr.mxu0 0.0
    %292 = vmatpush1.msra.mxu0 0.0
    %293 = vmatprep.subr.mxu0 0.0
    %294 = vmatpush1.msra.mxu0 0.0
    %295 = vmatprep.subr.mxu0 0.0
    %296 = vmatpush1.msra.mxu0 0.0
    %297 = vmatprep.subr.mxu0 0.0
    %298 = vmatpush1.msra.mxu0 0.0
    %299 = vmatprep.mubr.f32.mxu0 0.0
    %300 = vmatmul.mubr.f32.gmra.mrb[0].mxu0 %v218
    %v301 = vpop.f32.mrb[0].mxu0
    %v302 = vadd.f32 0.0, %v301
    %v303 = vpop.f32.mrb[0].mxu0
    %304 = vdwg.mxu0
    %v305 = vmul.f32 %v302, 0.001953125
    %v306 = vmul.f32 %v305, %v305
    %v308 = vrot.slane %v306, 7
    %v310 = vsub.f32 %v305, %v308
    %v311 = vmax.f32 %v310, 0.0
    %v312 = vld [vmem:[%s4] sm:$0x1]
    %v313 = vadd.f32 %v311, 1e-08
    %v314 = vrsqrt.pop %v313
    %v317 = vunpack.c.l.s4 1966171168
    %v318 = vunpack.c.0.s8 %v317
    %v319 = vlaneseq
    %v320 = vshrl.u32 %v319, 7
    %v321 = vsub.s32 %v318, %v320
    %v322 = vrot.slane %v314, %v321
    %v323 = vcombine.high %v322, %v322
    %v325 = vunpack.c.l.s4 1966171168
    %v326 = vunpack.c.0.s8 %v325
    %v327 = vlaneseq
    %v328 = vshrl.u32 %v327, 7
    %v329 = vsub.s32 %v326, %v328
    %v330 = vrot.slane %v323, %v329
    %v332 = vmul.f32 %v312, %v330
    %v333 = vld [vmem:[%s5] sm:$0x1]
    %v334 = vmul.f32 %v305, %v332
    %v335 = vsub.f32 %v333, %v334
    %v337 = vlaneseq
    %v338 = vshrl.u32 %v337, 7
    %v339 = vsub.s32 0, %v338
    %v340 = vrot.slane %v335, %v339
    %v342 = vsel %vm217, %v332, %v340
    %v343 = vld [vmem:[%s3] sm:$0xff]
    %vm344 = vcmask 64512
    %v346 = vsel %vm344, %v342, 0
    %348 = vmatprep.subr.mxu0 0.0
    %349 = vmatpush1.msra.mxu0 %v343
    %350 = vmatprep.subr.mxu0 0.0
    %351 = vmatpush1.msra.mxu0 0.0
    %352 = vmatprep.subr.mxu0 0.0
    %353 = vmatpush1.msra.mxu0 0.0
    %354 = vmatprep.subr.mxu0 0.0
    %355 = vmatpush1.msra.mxu0 0.0
    %356 = vmatprep.subr.mxu0 0.0
    %357 = vmatpush1.msra.mxu0 0.0
    %358 = vmatprep.subr.mxu0 0.0
    %359 = vmatpush1.msra.mxu0 0.0
    %360 = vmatprep.subr.mxu0 0.0
    %361 = vmatpush1.msra.mxu0 0.0
    %362 = vmatprep.subr.mxu0 0.0
    %363 = vmatpush1.msra.mxu0 0.0
    %364 = vmatprep.subr.mxu0 0.0
    %365 = vmatpush1.msra.mxu0 0.0
    %366 = vmatprep.subr.mxu0 0.0
    %367 = vmatpush1.msra.mxu0 0.0
    %368 = vmatprep.subr.mxu0 0.0
    %369 = vmatpush1.msra.mxu0 0.0
    %370 = vmatprep.subr.mxu0 0.0
    %371 = vmatpush1.msra.mxu0 0.0
    %372 = vmatprep.subr.mxu0 0.0
    %373 = vmatpush1.msra.mxu0 0.0
    %374 = vmatprep.subr.mxu0 0.0
    %375 = vmatpush1.msra.mxu0 0.0
    %376 = vmatprep.subr.mxu0 0.0
    %377 = vmatpush1.msra.mxu0 0.0
    %378 = vmatprep.subr.mxu0 0.0
    %379 = vmatpush1.msra.mxu0 0.0
    %380 = vmatprep.subr.mxu0 0.0
    %381 = vmatpush1.msra.mxu0 0.0
    %382 = vmatprep.subr.mxu0 0.0
    %383 = vmatpush1.msra.mxu0 0.0
    %384 = vmatprep.subr.mxu0 0.0
    %385 = vmatpush1.msra.mxu0 0.0
    %386 = vmatprep.subr.mxu0 0.0
    %387 = vmatpush1.msra.mxu0 0.0
    %388 = vmatprep.subr.mxu0 0.0
    %389 = vmatpush1.msra.mxu0 0.0
    %390 = vmatprep.subr.mxu0 0.0
    %391 = vmatpush1.msra.mxu0 0.0
    %392 = vmatprep.subr.mxu0 0.0
    %393 = vmatpush1.msra.mxu0 0.0
    %394 = vmatprep.subr.mxu0 0.0
    %395 = vmatpush1.msra.mxu0 0.0
    %396 = vmatprep.subr.mxu0 0.0
    %397 = vmatpush1.msra.mxu0 0.0
    %398 = vmatprep.subr.mxu0 0.0
    %399 = vmatpush1.msra.mxu0 0.0
    %400 = vmatprep.subr.mxu0 0.0
    %401 = vmatpush1.msra.mxu0 0.0
    %402 = vmatprep.subr.mxu0 0.0
    %403 = vmatpush1.msra.mxu0 0.0
    %404 = vmatprep.subr.mxu0 0.0
    %405 = vmatpush1.msra.mxu0 0.0
    %406 = vmatprep.subr.mxu0 0.0
    %407 = vmatpush1.msra.mxu0 0.0
    %408 = vmatprep.subr.mxu0 0.0
    %409 = vmatpush1.msra.mxu0 0.0
    %410 = vmatprep.subr.mxu0 0.0
    %411 = vmatpush1.msra.mxu0 0.0
    %412 = vmatprep.mubr.f32.mxu0 0.0
    %413 = vmatmul.mubr.f32.gmra.mrb[0].mxu0 %v346
    %v414 = vpop.f32.mrb[0].mxu0
    %v415 = vadd.f32 0.0, %v414
    %v416 = vpop.f32.mrb[0].mxu0
    %417 = vdwg.mxu0
    %v418 = vlaneseq
    %v419 = vshrl.u32 %v418, 7
    %v420 = vsub.s32 0, %v419
    %v421 = vrot.slane %v415, %v420
    %v422 = vmul.f32 %v191, %v421
    %v423 = vmul.f32 %v192, %v421
    %v424 = vmul.f32 %v193, %v421
    %v425 = vmul.f32 %v194, %v421
    %v426 = vlaneseq
    %v427 = vshrl.u32 %v426, 7
    %v428 = vsub.s32 1, %v427
    %v429 = vrot.slane %v415, %v428
    %v430 = vadd.f32 %v422, %v429
    %v431 = vadd.f32 %v423, %v429
    %v432 = vadd.f32 %v424, %v429
    %v433 = vadd.f32 %v425, %v429
    %v434 = vmax.f32 %v430, 0.0
    %v435 = vmax.f32 %v431, 0.0
    %v436 = vmax.f32 %v432, 0.0
    %v437 = vmax.f32 %v433, 0.0
    %438 = vst [vmem:[#allocation5] sm:$0xff] %v434
    %439 = vst [vmem:[#allocation5 + $0x8] sm:$0xff] %v435
    %440 = vst [vmem:[#allocation5 + $0x10] sm:$0xff] %v436
    %441 = vst [vmem:[#allocation5 + $0x18] sm:$0xff] %v437
    // Predicated region
    $region30: #{tpu_custom_call.1} parent=1 // pred_check
      _
    $region31: #{tpu_custom_call.1} parent=1 // pred_check_branch
      %443 = sbr.rel (0) target = $region33
    $region32: #{tpu_custom_call.1} parent=1 // pred_region
      %s445 = ssub.s32 512, 512
      %446 = vsyncadd [#allocation4], %s445
      %s447 = sshll.u32 [#allocation5], 4
      %s448 = int_to_ptr.vmem [resolvable:$true] %s447
      %453 = dma.vmem_to_hbm [thread:$0]  %s448, 512, %s6, [#allocation4], 128, 128, 8
    $region33: #{tpu_custom_call.1} parent=1 // pred_fallthru
      _
    // Predicated region
    $region34: #{tpu_custom_call.1} parent=1 // pred_check
      _
    $region35: #{tpu_custom_call.1} parent=1 // pred_check_branch
      %455 = sbr.rel (0) target = $region37
    $region36: #{tpu_custom_call.1} parent=1 // pred_region
      %456 = dma.done [#allocation4], 512
    $region37: #{tpu_custom_call.1} parent=1 // pred_fallthru
      _
    %457 = vsyncpa [#allocation3], 1
    %458 = vsyncpa [#allocation4], 1

</llo_original>
